<compile_context>
chip_gen: v7x
topology: tpu7x:2x2x1
jax: 0.10.0
libtpu: 0.0.40
codegen_flags: <defaults>
</compile_context>

<pallas_src>
import functools

import jax
import jax.numpy as jnp
from jax.experimental import pallas as pl
from jax.experimental.pallas import tpu as pltpu


def _round_up(x, m):
    return ((x + m - 1) // m) * m


def _resident_spec(shape, index_map):
    """BlockSpec for an operand whose block index never changes: single-buffer it."""
    try:
        return pl.BlockSpec(shape, index_map, pipeline_mode=pl.Buffered(1))
    except TypeError:  # older Pallas without the pipeline_mode kwarg
        return pl.BlockSpec(shape, index_map)


def _classifier_kernel(x_ref, wt_ref, bt_ref, gamma_ref, beta_ref,
                       wd_ref, bd_ref, out_ref, h_ref, *, eps):
    # Transform + GELU + LayerNorm: compute once per row tile (first vocab tile)
    # into the bf16 VMEM scratch, reuse across all vocab tiles of this row tile.
    @pl.when(pl.program_id(1) == 0)
    def _():
        h = jnp.dot(x_ref[...], wt_ref[...],
                    preferred_element_type=jnp.float32) + bt_ref[...]
        # Exact (erf) GELU, matching torch ACT2FN["gelu"].
        h = 0.5 * h * (1.0 + jax.lax.erf(h * 0.7071067811865476))
        # LayerNorm over hidden dim (biased variance, eps inside rsqrt).
        mean = jnp.mean(h, axis=-1, keepdims=True)
        centered = h - mean
        var = jnp.mean(centered * centered, axis=-1, keepdims=True)
        h = centered * jax.lax.rsqrt(var + eps)
        h = h * gamma_ref[...] + beta_ref[...]
        h_ref[...] = h.astype(jnp.bfloat16)   # cast once, not once per vocab tile

    # Decoder matmul for this (row tile, vocab tile): [TM,H] @ [H,TN] + [1,TN]
    logits = jnp.dot(h_ref[...], wd_ref[...],
                     preferred_element_type=jnp.float32) + bd_ref[...]
    out_ref[...] = logits.astype(out_ref.dtype)


def base_classifier_forward(last_hidden_states, params, *, eps=1e-5,
                            tm_target=512, tn_target=512,
                            out_dtype=jnp.float32,
                            vmem_budget_bytes=44 << 20):
    """last_hidden_states: [B, S, H]. Returns logits [B, S, V] in out_dtype."""
    B, S, H = last_hidden_states.shape
    V = params["decoder_weight"].shape[0]
    M = B * S

    # ---- Row tile TM: multiple of 16 (bf16 sublane packing). Prefer >= 2 row
    # tiles so the "parallel" row axis keeps both v7x TensorCores busy.
    if M <= 16:
        TM = 16
    elif M >= 2 * tm_target:
        TM = tm_target
    else:
        TM = _round_up((M + 1) // 2, 16)

    # ---- Vocab tile TN: lane-dense multiple of 128.
    if V >= tn_target:
        TN = tn_target
    else:
        TN = _round_up(V, 128)

    # ---- VMEM budget (sized for v7x's 64 MiB): shrink TN first (no extra HBM
    # traffic), then TM, until the footprint fits.
    out_bytes = jnp.dtype(out_dtype).itemsize

    def footprint(tm, tn):
        wt = H * H * 2                        # Wt bf16, single-buffered
        small = 3 * H * 4 + 2 * tn * 4        # bt/gamma/beta (1-buf) + bd (2-buf)
        x = 2 * tm * H * 2                    # x bf16, double-buffered
        wd = 2 * H * tn * 2                   # Wd bf16, double-buffered
        out = 2 * tm * tn * out_bytes         # out tile, double-buffered
        h = tm * H * 2                        # h scratch bf16
        return wt + small + x + wd + out + h

    while footprint(TM, TN) > vmem_budget_bytes and TN > 128:
        TN = max(128, _round_up(TN // 2, 128))
    while footprint(TM, TN) > vmem_budget_bytes and TM > 16:
        TM = max(16, _round_up(TM // 2, 16))
    # TODO(synk): for very large H (Wt alone > VMEM budget) the transform matmul
    # would need K-tiling (an extra grid axis); not implemented here.

    M_pad = _round_up(M, TM)
    V_pad = _round_up(V, TN)
    vmem_limit = int(min(max(footprint(TM, TN) + (8 << 20), 32 << 20), 56 << 20))

    # Inputs: x in bf16 (halves HBM read + VMEM tile; it only feeds the MXU).
    x2d = last_hidden_states.reshape(M, H).astype(jnp.bfloat16)
    if M_pad != M:
        x2d = jnp.pad(x2d, ((0, M_pad - M), (0, 0)))

    # Glue: pre-transpose PyTorch-style (out,in) weights to (in,out); bf16 for MXU.
    wt = params["transform_weight"].T.astype(jnp.bfloat16)           # [H, H]
    bt = params["transform_bias"].reshape(1, H).astype(jnp.float32)
    gamma = params["ln_weight"].reshape(1, H).astype(jnp.float32)
    beta = params["ln_bias"].reshape(1, H).astype(jnp.float32)
    wd = params["decoder_weight"].T.astype(jnp.bfloat16)             # [H, V]
    bd = params["decoder_bias"].reshape(1, V).astype(jnp.float32)
    if V_pad != V:
        wd = jnp.pad(wd, ((0, 0), (0, V_pad - V)))
        bd = jnp.pad(bd, ((0, 0), (0, V_pad - V)))

    kernel = functools.partial(_classifier_kernel, eps=float(eps))

    grid = (M_pad // TM, V_pad // TN)
    out = pl.pallas_call(
        kernel,
        out_shape=jax.ShapeDtypeStruct((M_pad, V_pad), out_dtype),
        grid=grid,
        in_specs=[
            pl.BlockSpec((TM, H), lambda i, j: (i, 0)),      # x row tile (changes with i)
            _resident_spec((H, H), lambda i, j: (0, 0)),     # Wt (resident, 1-buf)
            _resident_spec((1, H), lambda i, j: (0, 0)),     # bt
            _resident_spec((1, H), lambda i, j: (0, 0)),     # gamma
            _resident_spec((1, H), lambda i, j: (0, 0)),     # beta
            pl.BlockSpec((H, TN), lambda i, j: (0, j)),      # Wd vocab slab
            pl.BlockSpec((1, TN), lambda i, j: (0, j)),      # bd vocab slab
        ],
        out_specs=pl.BlockSpec((TM, TN), lambda i, j: (i, j)),
        scratch_shapes=[pltpu.VMEM((TM, H), jnp.bfloat16)],  # LayerNorm'd h, reused across j
        compiler_params=pltpu.CompilerParams(
            dimension_semantics=("parallel", "arbitrary"),
            vmem_limit_bytes=vmem_limit),
    )(x2d, wt, bt, gamma, beta, wd, bd)

    return out[:M, :V].reshape(B, S, V)


def init_params(key, hidden_size, vocab_size):
    k1, k2, k3 = jax.random.split(key, 3)
    return {
        # TransformLayer: nn.Linear(H, H) weight/bias
        "transform_weight": 0.02 * jax.random.normal(k1, (hidden_size, hidden_size), jnp.float32),
        "transform_bias": 0.02 * jax.random.normal(k2, (hidden_size,), jnp.float32),
        # LayerNorm(H): ones / zeros (PyTorch default init)
        "ln_weight": jnp.ones((hidden_size,), jnp.float32),
        "ln_bias": jnp.zeros((hidden_size,), jnp.float32),
        # DecoderLayer: nn.Linear(H, V, bias=False) weight, plus zeros bias Parameter
        "decoder_weight": 0.02 * jax.random.normal(k3, (vocab_size, hidden_size), jnp.float32),
        "decoder_bias": jnp.zeros((vocab_size,), jnp.float32),
    }


def _reference(x, params, eps=1e-5):
    h = x @ params["transform_weight"].T + params["transform_bias"]
    h = 0.5 * h * (1.0 + jax.lax.erf(h / jnp.sqrt(2.0)))
    mean = jnp.mean(h, axis=-1, keepdims=True)
    var = jnp.mean((h - mean) ** 2, axis=-1, keepdims=True)
    h = (h - mean) / jnp.sqrt(var + eps)
    h = h * params["ln_weight"] + params["ln_bias"]
    return h @ params["decoder_weight"].T + params["decoder_bias"]


if __name__ == "__main__":
    key = jax.random.PRNGKey(0)

    # Case 1: small shapes; exercises the single-row-tile and vocab-padding paths.
    B, S, H, V = 2, 7, 128, 320
    kx, kp, key = jax.random.split(key, 3)
    x = jax.random.normal(kx, (B, S, H), jnp.float32)
    params = init_params(kp, H, V)
    logits = jax.block_until_ready(base_classifier_forward(x, params))
    ref = _reference(x, params)
    assert logits.shape == (B, S, V)
    # bf16 MXU inputs / bf16 h scratch (f32 accumulation) -> loosened tolerance.
    assert jnp.allclose(logits, ref, atol=2e-2, rtol=2e-2), \
        float(jnp.max(jnp.abs(logits - ref)))

    # Case 2: exercises >= 2 row tiles (megacore path) and multiple vocab tiles.
    B2, S2, H2, V2 = 2, 40, 128, 640
    kx2, kp2 = jax.random.split(key)
    x2 = jax.random.normal(kx2, (B2, S2, H2), jnp.float32)
    params2 = init_params(kp2, H2, V2)
    logits2 = jax.block_until_ready(base_classifier_forward(x2, params2))
    ref2 = _reference(x2, params2)
    assert logits2.shape == (B2, S2, V2)
    assert jnp.allclose(logits2, ref2, atol=2e-2, rtol=2e-2), \
        float(jnp.max(jnp.abs(logits2 - ref2)))

    print("KERNEL_OK")
</pallas_src>

<mosaic_0001>
module attributes {stable_mosaic.version = 11 : i64} {
  func.func @_classifier_kernel(%arg0: i32, %arg1: i32, %arg2: memref<16x128xbf16, #tpu.memory_space<vmem>>, %arg3: memref<128x128xbf16, #tpu.memory_space<vmem>>, %arg4: memref<1x128xf32, #tpu.memory_space<vmem>>, %arg5: memref<1x128xf32, #tpu.memory_space<vmem>>, %arg6: memref<1x128xf32, #tpu.memory_space<vmem>>, %arg7: memref<128x384xbf16, #tpu.memory_space<vmem>>, %arg8: memref<1x384xf32, #tpu.memory_space<vmem>>, %arg9: memref<16x384xf32, #tpu.memory_space<vmem>>, %arg10: memref<16x128xbf16, #tpu.memory_space<vmem>>) attributes {dimension_semantics = [#tpu.dimension_semantics<parallel>, #tpu.dimension_semantics<arbitrary>], iteration_bounds = array<i64: 1, 1>, scalar_prefetch = 0 : i64, scratch_operands = 1 : i64, tpu.core_type = #tpu.core_type<tc>, window_params = [{transform_indices = @transform_0, window_bounds = array<i64: 16, 128>}, {pipeline_mode = #tpu.pipeline_mode<synchronous>, transform_indices = @transform_1, window_bounds = array<i64: 128, 128>}, {pipeline_mode = #tpu.pipeline_mode<synchronous>, transform_indices = @transform_2, window_bounds = array<i64: 1, 128>}, {pipeline_mode = #tpu.pipeline_mode<synchronous>, transform_indices = @transform_3, window_bounds = array<i64: 1, 128>}, {pipeline_mode = #tpu.pipeline_mode<synchronous>, transform_indices = @transform_4, window_bounds = array<i64: 1, 128>}, {transform_indices = @transform_5, window_bounds = array<i64: 128, 384>}, {transform_indices = @transform_6, window_bounds = array<i64: 1, 384>}, {transform_indices = @transform_7, window_bounds = array<i64: 16, 384>}]} {
    %c0_i32 = arith.constant 0 : i32
    %0 = arith.cmpi eq, %arg1, %c0_i32 : i32
    %1 = arith.extui %0 : i1 to i32
    %c0_i32_0 = arith.constant 0 : i32
    %2 = arith.cmpi ne, %1, %c0_i32_0 : i32
    scf.if %2 {
      %c0_8 = arith.constant 0 : index
      %c0_9 = arith.constant 0 : index
      %10 = vector.load %arg2[%c0_8, %c0_9] : memref<16x128xbf16, #tpu.memory_space<vmem>>, vector<16x128xbf16>
      %c0_10 = arith.constant 0 : index
      %c0_11 = arith.constant 0 : index
      %11 = vector.load %arg3[%c0_10, %c0_11] : memref<128x128xbf16, #tpu.memory_space<vmem>>, vector<128x128xbf16>
      %cst_12 = arith.constant dense<0.000000e+00> : vector<16x128xf32>
      %12 = tpu.matmul %10, %11, %cst_12 {dimension_numbers = #tpu.dot_dimension_numbers<[1], [0], [0], [1], [0, 0, 1, 1], [], []>} : vector<16x128xbf16>, vector<128x128xbf16>, vector<16x128xf32> -> vector<16x128xf32>
      %c0_13 = arith.constant 0 : index
      %c0_14 = arith.constant 0 : index
      %13 = vector.load %arg4[%c0_13, %c0_14] : memref<1x128xf32, #tpu.memory_space<vmem>>, vector<1x128xf32>
      %14 = vector.broadcast %13 : vector<1x128xf32> to vector<16x128xf32>
      %15 = arith.addf %12, %14 : vector<16x128xf32>
      %cst_15 = arith.constant 5.000000e-01 : f32
      %16 = vector.broadcast %cst_15 : f32 to vector<16x128xf32>
      %17 = arith.mulf %16, %15 : vector<16x128xf32>
      %cst_16 = arith.constant 0.707106769 : f32
      %18 = vector.broadcast %cst_16 : f32 to vector<16x128xf32>
      %19 = arith.mulf %15, %18 : vector<16x128xf32>
      %20 = math.erf %19 : vector<16x128xf32>
      %cst_17 = arith.constant 1.000000e+00 : f32
      %21 = vector.broadcast %cst_17 : f32 to vector<16x128xf32>
      %22 = arith.addf %21, %20 : vector<16x128xf32>
      %23 = arith.mulf %17, %22 : vector<16x128xf32>
      %cst_18 = arith.constant dense<0.000000e+00> : vector<16xf32>
      %24 = vector.multi_reduction <add>, %23, %cst_18 [1] : vector<16x128xf32> to vector<16xf32>
      %25 = vector.shape_cast %24 : vector<16xf32> to vector<16x1xf32>
      %cst_19 = arith.constant 1.280000e+02 : f32
      %26 = vector.broadcast %cst_19 : f32 to vector<16x1xf32>
      %27 = arith.divf %25, %26 : vector<16x1xf32>
      %28 = vector.broadcast %27 : vector<16x1xf32> to vector<16x128xf32>
      %29 = arith.subf %23, %28 : vector<16x128xf32>
      %30 = arith.mulf %29, %29 : vector<16x128xf32>
      %cst_20 = arith.constant dense<0.000000e+00> : vector<16xf32>
      %31 = vector.multi_reduction <add>, %30, %cst_20 [1] : vector<16x128xf32> to vector<16xf32>
      %32 = vector.shape_cast %31 : vector<16xf32> to vector<16x1xf32>
      %cst_21 = arith.constant 1.280000e+02 : f32
      %33 = vector.broadcast %cst_21 : f32 to vector<16x1xf32>
      %34 = arith.divf %32, %33 : vector<16x1xf32>
      %cst_22 = arith.constant 9.99999974E-6 : f32
      %35 = vector.broadcast %cst_22 : f32 to vector<16x1xf32>
      %36 = arith.addf %34, %35 : vector<16x1xf32>
      %37 = math.rsqrt %36 : vector<16x1xf32>
      %38 = vector.broadcast %37 : vector<16x1xf32> to vector<16x128xf32>
      %39 = arith.mulf %29, %38 : vector<16x128xf32>
      %c0_23 = arith.constant 0 : index
      %c0_24 = arith.constant 0 : index
      %40 = vector.load %arg5[%c0_23, %c0_24] : memref<1x128xf32, #tpu.memory_space<vmem>>, vector<1x128xf32>
      %41 = vector.broadcast %40 : vector<1x128xf32> to vector<16x128xf32>
      %42 = arith.mulf %39, %41 : vector<16x128xf32>
      %c0_25 = arith.constant 0 : index
      %c0_26 = arith.constant 0 : index
      %43 = vector.load %arg6[%c0_25, %c0_26] : memref<1x128xf32, #tpu.memory_space<vmem>>, vector<1x128xf32>
      %44 = vector.broadcast %43 : vector<1x128xf32> to vector<16x128xf32>
      %45 = arith.addf %42, %44 : vector<16x128xf32>
      %46 = arith.truncf %45 : vector<16x128xf32> to vector<16x128xbf16>
      %c0_27 = arith.constant 0 : index
      %c0_28 = arith.constant 0 : index
      %47 = vector.load %arg10[%c0_27, %c0_28] : memref<16x128xbf16, #tpu.memory_space<vmem>>, vector<16x128xbf16>
      tpu.vector_store %arg10[%c0_27, %c0_28], %46 {strides = array<i32>} : memref<16x128xbf16, #tpu.memory_space<vmem>>, vector<16x128xbf16>,
    } else {
    }
    %c0 = arith.constant 0 : index
    %c0_1 = arith.constant 0 : index
    %3 = vector.load %arg10[%c0, %c0_1] : memref<16x128xbf16, #tpu.memory_space<vmem>>, vector<16x128xbf16>
    %c0_2 = arith.constant 0 : index
    %c0_3 = arith.constant 0 : index
    %4 = vector.load %arg7[%c0_2, %c0_3] : memref<128x384xbf16, #tpu.memory_space<vmem>>, vector<128x384xbf16>
    %cst = arith.constant dense<0.000000e+00> : vector<16x384xf32>
    %5 = tpu.matmul %3, %4, %cst {dimension_numbers = #tpu.dot_dimension_numbers<[1], [0], [0], [1], [0, 0, 1, 1], [], []>} : vector<16x128xbf16>, vector<128x384xbf16>, vector<16x384xf32> -> vector<16x384xf32>
    %c0_4 = arith.constant 0 : index
    %c0_5 = arith.constant 0 : index
    %6 = vector.load %arg8[%c0_4, %c0_5] : memref<1x384xf32, #tpu.memory_space<vmem>>, vector<1x384xf32>
    %7 = vector.broadcast %6 : vector<1x384xf32> to vector<16x384xf32>
    %8 = arith.addf %5, %7 : vector<16x384xf32>
    %c0_6 = arith.constant 0 : index
    %c0_7 = arith.constant 0 : index
    %9 = vector.load %arg9[%c0_6, %c0_7] : memref<16x384xf32, #tpu.memory_space<vmem>>, vector<16x384xf32>
    tpu.vector_store %arg9[%c0_6, %c0_7], %8 {strides = array<i32>} : memref<16x384xf32, #tpu.memory_space<vmem>>, vector<16x384xf32>,
    return
  }
  func.func @transform_0(%arg0: i32, %arg1: i32) -> (i32, i32) {
    %c0_i32 = arith.constant 0 : i32
    %c0_i32_0 = arith.constant 0 : i32
    return %arg0, %c0_i32 : i32, i32
  }
  func.func @transform_1(%arg0: i32, %arg1: i32) -> (i32, i32) {
    %c0_i32 = arith.constant 0 : i32
    %c0_i32_0 = arith.constant 0 : i32
    %c0_i32_1 = arith.constant 0 : i32
    return %c0_i32, %c0_i32_0 : i32, i32
  }
  func.func @transform_2(%arg0: i32, %arg1: i32) -> (i32, i32) {
    %c0_i32 = arith.constant 0 : i32
    %c0_i32_0 = arith.constant 0 : i32
    %c0_i32_1 = arith.constant 0 : i32
    return %c0_i32, %c0_i32_0 : i32, i32
  }
  func.func @transform_3(%arg0: i32, %arg1: i32) -> (i32, i32) {
    %c0_i32 = arith.constant 0 : i32
    %c0_i32_0 = arith.constant 0 : i32
    %c0_i32_1 = arith.constant 0 : i32
    return %c0_i32, %c0_i32_0 : i32, i32
  }
  func.func @transform_4(%arg0: i32, %arg1: i32) -> (i32, i32) {
    %c0_i32 = arith.constant 0 : i32
    %c0_i32_0 = arith.constant 0 : i32
    %c0_i32_1 = arith.constant 0 : i32
    return %c0_i32, %c0_i32_0 : i32, i32
  }
  func.func @transform_5(%arg0: i32, %arg1: i32) -> (i32, i32) {
    %c0_i32 = arith.constant 0 : i32
    %c0_i32_0 = arith.constant 0 : i32
    return %c0_i32, %arg1 : i32, i32
  }
  func.func @transform_6(%arg0: i32, %arg1: i32) -> (i32, i32) {
    %c0_i32 = arith.constant 0 : i32
    %c0_i32_0 = arith.constant 0 : i32
    return %c0_i32, %arg1 : i32, i32
  }
  func.func @transform_7(%arg0: i32, %arg1: i32) -> (i32, i32) {
    %c0_i32 = arith.constant 0 : i32
    return %arg0, %arg1 : i32, i32
  }
}

</mosaic_0001>

<llo_original>
// kernel: tpu_custom_call.1
$region0: #{tpu_custom_call.1}
  #allocation0 [shape = 'u32[]', space=smem, size = 0x4, offset = 0x4, fixed_abs, tag = 'smem constant byte address 0x4 - core index']
  #allocation1 [shape = 'u32[144,128]{1,0:T(1,128)}', space=vmem, size = 0x12000, scoped, tag = 'internal scratch']
  #allocation2 [shape = 'bf16[16,128]{1,0:T(16,128)(2,1)}', space=vmem, size = 0x1000, scoped, tag = 'scratch operand']
  %s0 = inlined_call_operand.hbm [shape: bf16[16,128], index: 0, kind: input, shape index: {}]
  %s1 = inlined_call_operand.hbm [shape: bf16[128,128], index: 1, kind: input, shape index: {}]
  %s2 = inlined_call_operand.vmem [shape: f32[1,128], index: 2, kind: input, shape index: {}]
  %s3 = inlined_call_operand.vmem [shape: f32[1,128], index: 3, kind: input, shape index: {}]
  %s4 = inlined_call_operand.vmem [shape: f32[1,128], index: 4, kind: input, shape index: {}]
  %s5 = inlined_call_operand.hbm [shape: bf16[128,384], index: 5, kind: input, shape index: {}]
  %s6 = inlined_call_operand.vmem [shape: f32[1,384], index: 6, kind: input, shape index: {}]
  %s7 = inlined_call_operand.hbm [shape: f32[16,384], index: 7, kind: output, shape index: {}]
  %s8 = sld [smem:[#allocation0]]
  $region54: #{tpu_custom_call.1} parent=0
    _
  %s10 = ssub.s32 1, %s8
  %s11 = scalar_select 0, %s10, %s8
  $region1: #{tpu_custom_call.1} parent=0
    #allocation3 [shape = 'u8[4096]{0}', space=vmem, size = 0x1000, scoped, tag = 'input window, operand 0, single buffered']
    #allocation4 [shape = 's32[1]{0}', space=sflag, size = 0x4, scoped, tag = 'scoped memory for tpu_custom_call.1']
    #allocation5 [shape = 's32[1]{0}', space=sflag, size = 0x4, scoped, tag = 'scoped memory for tpu_custom_call.1']
    #allocation6 [shape = 'u8[32768]{0}', space=vmem, size = 0x8000, scoped, tag = 'input window, operand 1, single buffered']
    #allocation7 [shape = 's32[1]{0}', space=sflag, size = 0x4, scoped, tag = 'scoped memory for tpu_custom_call.1']
    #allocation8 [shape = 'u8[98304]{0}', space=vmem, size = 0x18000, scoped, tag = 'input window, operand 5, single buffered']
    #allocation9 [shape = 'u8[24576]{0}', space=vmem, size = 0x6000, scoped, tag = 'output window, operand 0, single buffered']
    %12 = vsyncpa [#allocation4], 0
    %13 = vsyncpa [#allocation7], 0
    %14 = vsyncpa [#allocation5], 0
    // Predicated region
    $region2: #{tpu_custom_call.1} parent=1 // pred_check
      _
    $region3: #{tpu_custom_call.1} parent=1 // pred_check_branch
      %16 = sbr.rel (0) target = $region5
    $region4: #{tpu_custom_call.1} parent=1 // pred_region
      %s18 = ssub.s32 128, 128
      %19 = vsyncadd [#allocation4], %s18
      %s20 = sshll.u32 [#allocation3], 4
      %s21 = int_to_ptr.vmem [resolvable:$true] %s20
      %26 = dma.hbm_to_vmem [thread:$0]  %s0, 128, %s21, [#allocation4], 64, 64, 4
    $region5: #{tpu_custom_call.1} parent=1 // pred_fallthru
      _
    // Predicated region
    $region6: #{tpu_custom_call.1} parent=1 // pred_check
      _
    $region7: #{tpu_custom_call.1} parent=1 // pred_check_branch
      %28 = sbr.rel (0) target = $region9
    $region8: #{tpu_custom_call.1} parent=1 // pred_region
      %s30 = ssub.s32 1024, 1024
      %31 = vsyncadd [#allocation7], %s30
      %s32 = sshll.u32 [#allocation6], 4
      %s33 = int_to_ptr.vmem [resolvable:$true] %s32
      %38 = dma.hbm_to_vmem [thread:$0]  %s1, 1024, %s33, [#allocation7], 64, 64, 4
    $region9: #{tpu_custom_call.1} parent=1 // pred_fallthru
      _
    // Predicated region
    $region10: #{tpu_custom_call.1} parent=1 // pred_check
      _
    $region11: #{tpu_custom_call.1} parent=1 // pred_check_branch
      %40 = sbr.rel (0) target = $region13
    $region12: #{tpu_custom_call.1} parent=1 // pred_region
      _
    $region13: #{tpu_custom_call.1} parent=1 // pred_fallthru
      _
    // Predicated region
    $region14: #{tpu_custom_call.1} parent=1 // pred_check
      _
    $region15: #{tpu_custom_call.1} parent=1 // pred_check_branch
      %42 = sbr.rel (0) target = $region17
    $region16: #{tpu_custom_call.1} parent=1 // pred_region
      _
    $region17: #{tpu_custom_call.1} parent=1 // pred_fallthru
      _
    // Predicated region
    $region18: #{tpu_custom_call.1} parent=1 // pred_check
      _
    $region19: #{tpu_custom_call.1} parent=1 // pred_check_branch
      %44 = sbr.rel (0) target = $region21
    $region20: #{tpu_custom_call.1} parent=1 // pred_region
      _
    $region21: #{tpu_custom_call.1} parent=1 // pred_fallthru
      _
    // Predicated region
    $region22: #{tpu_custom_call.1} parent=1 // pred_check
      _
    $region23: #{tpu_custom_call.1} parent=1 // pred_check_branch
      %46 = sbr.rel (0) target = $region25
    $region24: #{tpu_custom_call.1} parent=1 // pred_region
      %s48 = ssub.s32 3072, 3072
      %49 = vsyncadd [#allocation7], %s48
      %s50 = sshll.u32 [#allocation8], 4
      %s51 = int_to_ptr.vmem [resolvable:$true] %s50
      %56 = dma.hbm_to_vmem [thread:$0]  %s5, 3072, %s51, [#allocation7], 192, 192, 12
    $region25: #{tpu_custom_call.1} parent=1 // pred_fallthru
      _
    // Predicated region
    $region26: #{tpu_custom_call.1} parent=1 // pred_check
      _
    $region27: #{tpu_custom_call.1} parent=1 // pred_check_branch
      %58 = sbr.rel (0) target = $region29
    $region28: #{tpu_custom_call.1} parent=1 // pred_region
      _
    $region29: #{tpu_custom_call.1} parent=1 // pred_fallthru
      _
    // Predicated region
    $region30: #{tpu_custom_call.1} parent=1 // pred_check
      _
    $region31: #{tpu_custom_call.1} parent=1 // pred_check_branch
      %60 = sbr.rel (0) target = $region33
    $region32: #{tpu_custom_call.1} parent=1 // pred_region
      %61 = dma.done [#allocation4], 128
    $region33: #{tpu_custom_call.1} parent=1 // pred_fallthru
      _
    // Predicated region
    $region34: #{tpu_custom_call.1} parent=1 // pred_check
      _
    $region35: #{tpu_custom_call.1} parent=1 // pred_check_branch
      %63 = sbr.rel (0) target = $region37
    $region36: #{tpu_custom_call.1} parent=1 // pred_region
      %64 = dma.done [#allocation7], 1024
    $region37: #{tpu_custom_call.1} parent=1 // pred_fallthru
      _
    // Predicated region
    $region38: #{tpu_custom_call.1} parent=1 // pred_check
      _
    $region39: #{tpu_custom_call.1} parent=1 // pred_check_branch
      %66 = sbr.rel (0) target = $region41
    $region40: #{tpu_custom_call.1} parent=1 // pred_region
      %67 = dma.done [#allocation7], 3072
    $region41: #{tpu_custom_call.1} parent=1 // pred_fallthru
      _
    %p69 = scmp.eq.s32.totalorder 0, 0
    // Predicated region
    $region42: #{tpu_custom_call.1} parent=1 // pred_check
      %p70 = pneg %p69
    $region43: #{tpu_custom_call.1} parent=1 // pred_check_branch
      %72 = sbr.rel (%p70) target = $region45
    $region44: #{tpu_custom_call.1} parent=1 // pred_region
      %v73 = vld [vmem:[#allocation3] sm:$0xf]
      %v74 = vld [vmem:[#allocation3 + $0x4] sm:$0xf]
      %v75 = vld [vmem:[#allocation6] sm:$0xf]
      %v76 = vld [vmem:[#allocation6 + $0x4] sm:$0xf]
      %v77 = vld [vmem:[#allocation6 + $0x8] sm:$0xf]
      %v78 = vld [vmem:[#allocation6 + $0xc] sm:$0xf]
      %v79 = vld [vmem:[#allocation6 + $0x10] sm:$0xf]
      %v80 = vld [vmem:[#allocation6 + $0x14] sm:$0xf]
      %v81 = vld [vmem:[#allocation6 + $0x18] sm:$0xf]
      %v82 = vld [vmem:[#allocation6 + $0x1c] sm:$0xf]
      %v83 = vld [vmem:[#allocation6 + $0x20] sm:$0xf]
      %v84 = vld [vmem:[#allocation6 + $0x24] sm:$0xf]
      %v85 = vld [vmem:[#allocation6 + $0x28] sm:$0xf]
      %v86 = vld [vmem:[#allocation6 + $0x2c] sm:$0xf]
      %v87 = vld [vmem:[#allocation6 + $0x30] sm:$0xf]
      %v88 = vld [vmem:[#allocation6 + $0x34] sm:$0xf]
      %v89 = vld [vmem:[#allocation6 + $0x38] sm:$0xf]
      %v90 = vld [vmem:[#allocation6 + $0x3c] sm:$0xf]
      %v91 = vld [vmem:[%s2] sm:$0x1]
      %v93 = vlaneseq
      %v94 = vshrl.u32 %v93, 7
      %v95 = vsub.s32 0, %v94
      %v96 = vrot.slane %v91, %v95
      %v100 = vunpack.c.l.b16 %v73
      %v101 = vunpack.c.l.b16 %v74
      %v102 = vpack.c.b16 %v101, %v100
      %v120 = vunpack.c.l.b16 %v75
      %v121 = vunpack.c.l.b16 %v76
      %v122 = vunpack.c.l.b16 %v77
      %v123 = vunpack.c.l.b16 %v78
      %v124 = vunpack.c.l.b16 %v79
      %v125 = vunpack.c.l.b16 %v80
      %v126 = vunpack.c.l.b16 %v81
      %v127 = vunpack.c.l.b16 %v82
      %v128 = vunpack.c.l.b16 %v83
      %v129 = vunpack.c.l.b16 %v84
      %v130 = vunpack.c.l.b16 %v85
      %v131 = vunpack.c.l.b16 %v86
      %v132 = vunpack.c.l.b16 %v87
      %v133 = vunpack.c.l.b16 %v88
      %v134 = vunpack.c.l.b16 %v89
      %v135 = vunpack.c.l.b16 %v90
      %v136 = vpack.c.b16 %v121, %v120
      %v137 = vpack.c.b16 %v123, %v122
      %v138 = vpack.c.b16 %v125, %v124
      %v139 = vpack.c.b16 %v127, %v126
      %v140 = vpack.c.b16 %v129, %v128
      %v141 = vpack.c.b16 %v131, %v130
      %v142 = vpack.c.b16 %v133, %v132
      %v143 = vpack.c.b16 %v135, %v134
      %152 = vmatprep.subr.bf16.mxu0 0
      %153 = vmatpush1.bf16.msra.mxu0 %v136
      %154 = vmatprep.subr.bf16.mxu0 0
      %155 = vmatpush1.bf16.msra.mxu0 %v137
      %156 = vmatprep.subr.bf16.mxu0 0
      %157 = vmatpush1.bf16.msra.mxu0 %v138
      %158 = vmatprep.subr.bf16.mxu0 0
      %159 = vmatpush1.bf16.msra.mxu0 %v139
      %160 = vmatprep.subr.bf16.mxu0 0
      %161 = vmatpush1.bf16.msra.mxu0 %v140
      %162 = vmatprep.subr.bf16.mxu0 0
      %163 = vmatpush1.bf16.msra.mxu0 %v141
      %164 = vmatprep.subr.bf16.mxu0 0
      %165 = vmatpush1.bf16.msra.mxu0 %v142
      %166 = vmatprep.subr.bf16.mxu0 0
      %167 = vmatpush1.bf16.msra.mxu0 %v143
      %168 = vmatprep.subr.bf16.mxu0 0
      %169 = vmatpush1.bf16.msra.mxu0 0
      %170 = vmatprep.subr.bf16.mxu0 0
      %171 = vmatpush1.bf16.msra.mxu0 0
      %172 = vmatprep.subr.bf16.mxu0 0
      %173 = vmatpush1.bf16.msra.mxu0 0
      %174 = vmatprep.subr.bf16.mxu0 0
      %175 = vmatpush1.bf16.msra.mxu0 0
      %176 = vmatprep.subr.bf16.mxu0 0
      %177 = vmatpush1.bf16.msra.mxu0 0
      %178 = vmatprep.subr.bf16.mxu0 0
      %179 = vmatpush1.bf16.msra.mxu0 0
      %180 = vmatprep.subr.bf16.mxu0 0
      %181 = vmatpush1.bf16.msra.mxu0 0
      %182 = vmatprep.subr.bf16.mxu0 0
      %183 = vmatpush1.bf16.msra.mxu0 0
      %184 = vmatprep.mubr.bf16.mxu0 0
      %185 = vmatmul.mubr.bf16.gmra.mrb[0].mxu0 %v102
      %v186 = vpop.f32.mrb[0].mxu0
      %v187 = vadd.f32 %v96, %v186
      %v188 = vpop.f32.mrb[0].mxu0
      %v189 = vpop.f32.mrb[0].mxu0
      %v190 = vadd.f32 %v96, %v189
      %v191 = vpop.f32.mrb[0].mxu0
      %192 = vdwg.mxu0
      %v193 = vmul.f32 %v187, 0.5
      %v194 = vmul.f32 %v190, 0.5
      %v195 = vmul.f32 %v187, 0.70710677
      %v196 = vmul.f32 %v190, 0.70710677
      %v197 = verf.f32.pop %v195
      %v198 = verf.f32.pop %v196
      %v199 = vadd.f32 %v197, 1.0
      %v200 = vadd.f32 %v198, 1.0
      %v201 = vmul.f32 %v193, %v199
      %v202 = vmul.f32 %v194, %v200
      %203 = vadd.xlane.f32.xlu0 %v201
      %v204 = vpop.xlane.xlu0 %203
      %205 = vadd.xlane.f32.xlu0 %v202
      %v206 = vpop.xlane.xlu0 %205
      %v207 = vrcp.pop 128.0
      %v208 = vmul.f32 %v204, %v207
      %v209 = vmul.f32 %v206, %v207
      %v210 = vsub.f32 %v201, %v208
      %v211 = vsub.f32 %v202, %v209
      %v212 = vmul.f32 %v210, %v210
      %v213 = vmul.f32 %v211, %v211
      %214 = vadd.xlane.f32.xlu0 %v212
      %v215 = vpop.xlane.xlu0 %214
      %216 = vadd.xlane.f32.xlu0 %v213
      %v217 = vpop.xlane.xlu0 %216
      %v218 = vmul.f32 %v215, %v207
      %v219 = vmul.f32 %v217, %v207
      %v220 = vadd.f32 %v218, 1e-05
      %v221 = vadd.f32 %v219, 1e-05
      %v222 = vrsqrt.pop %v220
      %v223 = vrsqrt.pop %v221
      %v224 = vmul.f32 %v210, %v222
      %v225 = vmul.f32 %v211, %v223
      %v226 = vld [vmem:[%s3] sm:$0x1]
      %v228 = vlaneseq
      %v229 = vshrl.u32 %v228, 7
      %v230 = vsub.s32 0, %v229
      %v231 = vrot.slane %v226, %v230
      %v233 = vmul.f32 %v224, %v231
      %v234 = vmul.f32 %v225, %v231
      %v235 = vld [vmem:[%s4] sm:$0x1]
      %v237 = vlaneseq
      %v238 = vshrl.u32 %v237, 7
      %v239 = vsub.s32 0, %v238
      %v240 = vrot.slane %v235, %v239
      %v242 = vadd.f32 %v233, %v240
      %v243 = vadd.f32 %v234, %v240
      %v244 = vpack.c.bf16 %v243, %v242
      %245 = vst [vmem:[#allocation2] sm:$0xff] %v244
    $region45: #{tpu_custom_call.1} parent=1 // pred_fallthru
      _
    %v246 = vld [vmem:[#allocation2] sm:$0xff]
    %v247 = vld [vmem:[#allocation8] sm:$0xff]
    %v248 = vld [vmem:[#allocation8 + $0x8] sm:$0xf]
    %v249 = vld [vmem:[#allocation8 + $0xc] sm:$0xff]
    %v250 = vld [vmem:[#allocation8 + $0x14] sm:$0xf]
    %v251 = vld [vmem:[#allocation8 + $0x18] sm:$0xff]
    %v252 = vld [vmem:[#allocation8 + $0x20] sm:$0xf]
    %v253 = vld [vmem:[#allocation8 + $0x24] sm:$0xff]
    %v254 = vld [vmem:[#allocation8 + $0x2c] sm:$0xf]
    %v255 = vld [vmem:[#allocation8 + $0x30] sm:$0xff]
    %v256 = vld [vmem:[#allocation8 + $0x38] sm:$0xf]
    %v257 = vld [vmem:[#allocation8 + $0x3c] sm:$0xff]
    %v258 = vld [vmem:[#allocation8 + $0x44] sm:$0xf]
    %v259 = vld [vmem:[#allocation8 + $0x48] sm:$0xff]
    %v260 = vld [vmem:[#allocation8 + $0x50] sm:$0xf]
    %v261 = vld [vmem:[#allocation8 + $0x54] sm:$0xff]
    %v262 = vld [vmem:[#allocation8 + $0x5c] sm:$0xf]
    %v263 = vld [vmem:[#allocation8 + $0x60] sm:$0xff]
    %v264 = vld [vmem:[#allocation8 + $0x68] sm:$0xf]
    %v265 = vld [vmem:[#allocation8 + $0x6c] sm:$0xff]
    %v266 = vld [vmem:[#allocation8 + $0x74] sm:$0xf]
    %v267 = vld [vmem:[#allocation8 + $0x78] sm:$0xff]
    %v268 = vld [vmem:[#allocation8 + $0x80] sm:$0xf]
    %v269 = vld [vmem:[#allocation8 + $0x84] sm:$0xff]
    %v270 = vld [vmem:[#allocation8 + $0x8c] sm:$0xf]
    %v271 = vld [vmem:[#allocation8 + $0x90] sm:$0xff]
    %v272 = vld [vmem:[#allocation8 + $0x98] sm:$0xf]
    %v273 = vld [vmem:[#allocation8 + $0x9c] sm:$0xff]
    %v274 = vld [vmem:[#allocation8 + $0xa4] sm:$0xf]
    %v275 = vld [vmem:[#allocation8 + $0xa8] sm:$0xff]
    %v276 = vld [vmem:[#allocation8 + $0xb0] sm:$0xf]
    %v277 = vld [vmem:[#allocation8 + $0xb4] sm:$0xff]
    %v278 = vld [vmem:[#allocation8 + $0xbc] sm:$0xf]
    %v279 = vld [vmem:[%s6] sm:$0x7]
    %v281 = vlaneseq
    %v282 = vshrl.u32 %v281, 7
    %v283 = vsub.s32 0, %v282
    %v284 = vrot.slane %v279, %v283
    %v285 = vlaneseq
    %v286 = vshrl.u32 %v285, 7
    %v287 = vsub.s32 1, %v286
    %v288 = vrot.slane %v279, %v287
    %v289 = vlaneseq
    %v290 = vshrl.u32 %v289, 7
    %v291 = vsub.s32 2, %v290
    %v292 = vrot.slane %v279, %v291
    %v328 = vunpack.c.l.b16 %v247
    %v329 = vunpack.c.h.b16 %v247
    %v330 = vunpack.c.l.b16 %v248
    %v331 = vunpack.c.l.b16 %v249
    %v332 = vunpack.c.h.b16 %v249
    %v333 = vunpack.c.l.b16 %v250
    %v334 = vunpack.c.l.b16 %v251
    %v335 = vunpack.c.h.b16 %v251
    %v336 = vunpack.c.l.b16 %v252
    %v337 = vunpack.c.l.b16 %v253
    %v338 = vunpack.c.h.b16 %v253
    %v339 = vunpack.c.l.b16 %v254
    %v340 = vunpack.c.l.b16 %v255
    %v341 = vunpack.c.h.b16 %v255
    %v342 = vunpack.c.l.b16 %v256
    %v343 = vunpack.c.l.b16 %v257
    %v344 = vunpack.c.h.b16 %v257
    %v345 = vunpack.c.l.b16 %v258
    %v346 = vunpack.c.l.b16 %v259
    %v347 = vunpack.c.h.b16 %v259
    %v348 = vunpack.c.l.b16 %v260
    %v349 = vunpack.c.l.b16 %v261
    %v350 = vunpack.c.h.b16 %v261
    %v351 = vunpack.c.l.b16 %v262
    %v352 = vunpack.c.l.b16 %v263
    %v353 = vunpack.c.h.b16 %v263
    %v354 = vunpack.c.l.b16 %v264
    %v355 = vunpack.c.l.b16 %v265
    %v356 = vunpack.c.h.b16 %v265
    %v357 = vunpack.c.l.b16 %v266
    %v358 = vunpack.c.l.b16 %v267
    %v359 = vunpack.c.h.b16 %v267
    %v360 = vunpack.c.l.b16 %v268
    %v361 = vunpack.c.l.b16 %v269
    %v362 = vunpack.c.h.b16 %v269
    %v363 = vunpack.c.l.b16 %v270
    %v364 = vunpack.c.l.b16 %v271
    %v365 = vunpack.c.h.b16 %v271
    %v366 = vunpack.c.l.b16 %v272
    %v367 = vunpack.c.l.b16 %v273
    %v368 = vunpack.c.h.b16 %v273
    %v369 = vunpack.c.l.b16 %v274
    %v370 = vunpack.c.l.b16 %v275
    %v371 = vunpack.c.h.b16 %v275
    %v372 = vunpack.c.l.b16 %v276
    %v373 = vunpack.c.l.b16 %v277
    %v374 = vunpack.c.h.b16 %v277
    %v375 = vunpack.c.l.b16 %v278
    %v376 = vpack.c.b16 %v331, %v328
    %v377 = vpack.c.b16 %v332, %v329
    %v378 = vpack.c.b16 %v333, %v330
    %v379 = vpack.c.b16 %v337, %v334
    %v380 = vpack.c.b16 %v338, %v335
    %v381 = vpack.c.b16 %v339, %v336
    %v382 = vpack.c.b16 %v343, %v340
    %v383 = vpack.c.b16 %v344, %v341
    %v384 = vpack.c.b16 %v345, %v342
    %v385 = vpack.c.b16 %v349, %v346
    %v386 = vpack.c.b16 %v350, %v347
    %v387 = vpack.c.b16 %v351, %v348
    %v388 = vpack.c.b16 %v355, %v352
    %v389 = vpack.c.b16 %v356, %v353
    %v390 = vpack.c.b16 %v357, %v354
    %v391 = vpack.c.b16 %v361, %v358
    %v392 = vpack.c.b16 %v362, %v359
    %v393 = vpack.c.b16 %v363, %v360
    %v394 = vpack.c.b16 %v367, %v364
    %v395 = vpack.c.b16 %v368, %v365
    %v396 = vpack.c.b16 %v369, %v366
    %v397 = vpack.c.b16 %v373, %v370
    %v398 = vpack.c.b16 %v374, %v371
    %v399 = vpack.c.b16 %v375, %v372
    %424 = vmatprep.subr.bf16.mxu0 %v377
    %425 = vmatpush1.bf16.msra.mxu0 %v376
    %426 = vmatprep.subr.bf16.mxu0 %v380
    %427 = vmatpush1.bf16.msra.mxu0 %v379
    %428 = vmatprep.subr.bf16.mxu0 %v383
    %429 = vmatpush1.bf16.msra.mxu0 %v382
    %430 = vmatprep.subr.bf16.mxu0 %v386
    %431 = vmatpush1.bf16.msra.mxu0 %v385
    %432 = vmatprep.subr.bf16.mxu0 %v389
    %433 = vmatpush1.bf16.msra.mxu0 %v388
    %434 = vmatprep.subr.bf16.mxu0 %v392
    %435 = vmatpush1.bf16.msra.mxu0 %v391
    %436 = vmatprep.subr.bf16.mxu0 %v395
    %437 = vmatpush1.bf16.msra.mxu0 %v394
    %438 = vmatprep.subr.bf16.mxu0 %v398
    %439 = vmatpush1.bf16.msra.mxu0 %v397
    %440 = vmatprep.subr.bf16.mxu0 0
    %441 = vmatpush1.bf16.msra.mxu0 0
    %442 = vmatprep.subr.bf16.mxu0 0
    %443 = vmatpush1.bf16.msra.mxu0 0
    %444 = vmatprep.subr.bf16.mxu0 0
    %445 = vmatpush1.bf16.msra.mxu0 0
    %446 = vmatprep.subr.bf16.mxu0 0
    %447 = vmatpush1.bf16.msra.mxu0 0
    %448 = vmatprep.subr.bf16.mxu0 0
    %449 = vmatpush1.bf16.msra.mxu0 0
    %450 = vmatprep.subr.bf16.mxu0 0
    %451 = vmatpush1.bf16.msra.mxu0 0
    %452 = vmatprep.subr.bf16.mxu0 0
    %453 = vmatpush1.bf16.msra.mxu0 0
    %454 = vmatprep.subr.bf16.mxu0 0
    %455 = vmatpush1.bf16.msra.mxu0 0
    %456 = vmatprep.mubr.bf16.mxu0 0
    %457 = vmatmul.mubr.bf16.gmra.mrb[0].mxu0 %v246
    %v458 = vpop.f32.mrb[0].mxu0
    %v459 = vadd.f32 %v284, %v458
    %v460 = vpop.f32.mrb[0].mxu0
    %v461 = vadd.f32 %v288, %v460
    %v462 = vpop.f32.mrb[0].mxu0
    %v463 = vadd.f32 %v284, %v462
    %v464 = vpop.f32.mrb[0].mxu0
    %v465 = vadd.f32 %v288, %v464
    %466 = vdwg.mxu0
    %467 = vmatprep.subr.bf16.mxu0 0
    %468 = vmatpush1.bf16.msra.mxu0 %v378
    %469 = vmatprep.subr.bf16.mxu0 0
    %470 = vmatpush1.bf16.msra.mxu0 %v381
    %471 = vmatprep.subr.bf16.mxu0 0
    %472 = vmatpush1.bf16.msra.mxu0 %v384
    %473 = vmatprep.subr.bf16.mxu0 0
    %474 = vmatpush1.bf16.msra.mxu0 %v387
    %475 = vmatprep.subr.bf16.mxu0 0
    %476 = vmatpush1.bf16.msra.mxu0 %v390
    %477 = vmatprep.subr.bf16.mxu0 0
    %478 = vmatpush1.bf16.msra.mxu0 %v393
    %479 = vmatprep.subr.bf16.mxu0 0
    %480 = vmatpush1.bf16.msra.mxu0 %v396
    %481 = vmatprep.subr.bf16.mxu0 0
    %482 = vmatpush1.bf16.msra.mxu0 %v399
    %483 = vmatprep.subr.bf16.mxu0 0
    %484 = vmatpush1.bf16.msra.mxu0 0
    %485 = vmatprep.subr.bf16.mxu0 0
    %486 = vmatpush1.bf16.msra.mxu0 0
    %487 = vmatprep.subr.bf16.mxu0 0
    %488 = vmatpush1.bf16.msra.mxu0 0
    %489 = vmatprep.subr.bf16.mxu0 0
    %490 = vmatpush1.bf16.msra.mxu0 0
    %491 = vmatprep.subr.bf16.mxu0 0
    %492 = vmatpush1.bf16.msra.mxu0 0
    %493 = vmatprep.subr.bf16.mxu0 0
    %494 = vmatpush1.bf16.msra.mxu0 0
    %495 = vmatprep.subr.bf16.mxu0 0
    %496 = vmatpush1.bf16.msra.mxu0 0
    %497 = vmatprep.subr.bf16.mxu0 0
    %498 = vmatpush1.bf16.msra.mxu0 0
    %499 = vmatprep.mubr.bf16.mxu0 0
    %500 = vmatmul.mubr.bf16.gmra.mrb[0].mxu0 %v246
    %v501 = vpop.f32.mrb[0].mxu0
    %v502 = vadd.f32 %v292, %v501
    %v503 = vpop.f32.mrb[0].mxu0
    %v504 = vpop.f32.mrb[0].mxu0
    %v505 = vadd.f32 %v292, %v504
    %v506 = vpop.f32.mrb[0].mxu0
    %507 = vdwg.mxu0
    %508 = vst [vmem:[#allocation9] sm:$0xff] %v459
    %509 = vst [vmem:[#allocation9 + $0x8] sm:$0xff] %v461
    %510 = vst [vmem:[#allocation9 + $0x10] sm:$0xff] %v502
    %511 = vst [vmem:[#allocation9 + $0x18] sm:$0xff] %v463
    %512 = vst [vmem:[#allocation9 + $0x20] sm:$0xff] %v465
    %513 = vst [vmem:[#allocation9 + $0x28] sm:$0xff] %v505
    // Predicated region
    $region46: #{tpu_custom_call.1} parent=1 // pred_check
      _
    $region47: #{tpu_custom_call.1} parent=1 // pred_check_branch
      %515 = sbr.rel (0) target = $region49
    $region48: #{tpu_custom_call.1} parent=1 // pred_region
      %s517 = ssub.s32 768, 768
      %518 = vsyncadd [#allocation5], %s517
      %s519 = sshll.u32 [#allocation9], 4
      %s520 = int_to_ptr.vmem [resolvable:$true] %s519
      %525 = dma.vmem_to_hbm [thread:$0]  %s520, 768, %s7, [#allocation5], 384, 384, 24
    $region49: #{tpu_custom_call.1} parent=1 // pred_fallthru
      _
    // Predicated region
    $region50: #{tpu_custom_call.1} parent=1 // pred_check
      _
    $region51: #{tpu_custom_call.1} parent=1 // pred_check_branch
      %527 = sbr.rel (0) target = $region53
    $region52: #{tpu_custom_call.1} parent=1 // pred_region
      %528 = dma.done [#allocation5], 768
    $region53: #{tpu_custom_call.1} parent=1 // pred_fallthru
      _
    %529 = vsyncpa [#allocation4], 1
    %530 = vsyncpa [#allocation7], 1
    %531 = vsyncpa [#allocation5], 1

</llo_original>
